<compile_context>
chip_gen: v7x
topology: tpu7x:2x2x1
jax: 0.10.0
libtpu: 0.0.40
codegen_flags: <defaults>
</compile_context>

<pallas_src>
import functools
import math

import jax
import jax.numpy as jnp
from jax import lax
from jax.experimental import pallas as pl
from jax.experimental.pallas import tpu as pltpu


# ------------------------- generation-aware defaults -------------------------

def _device_kind():
    try:
        return jax.devices()[0].device_kind.lower()
    except Exception:
        return ""


_KIND = _device_kind()
_IS_V7 = ("v7" in _KIND) or ("7x" in _KIND)
_IS_V5 = "v5" in _KIND

# v7x has only 64 MiB physical VMEM per TensorCore; leave headroom for the
# pipeliner's double buffers.  v5e / v6e have 128 MiB physical.
if _IS_V7:
    VMEM_LIMIT = 40 * 1024 * 1024
elif _IS_V5 or ("v6" in _KIND):
    VMEM_LIMIT = 96 * 1024 * 1024
else:
    VMEM_LIMIT = 48 * 1024 * 1024

# Attention tiles: 128 fills v5e's 4x128 MXU; 256 fills v6e/v7x's 2x256 MXU.
ATTN_TILE_TARGET = 128 if _IS_V5 else 256
# Projection tiles: bigger tiles cut weight/X re-streaming; v7x gets smaller
# tiles to stay well inside its 64 MiB VMEM.
PROJ_TM_TARGET = 256 if _IS_V7 else 512
PROJ_TN_TARGET = 256 if _IS_V7 else 512
PROJ_TK_TARGET = 256


def _pick_tile(dim, target, align):
    """Largest tile <= target that divides `dim` and is `align`-aligned.

    Falls back to the full dimension, which is always a legal block size."""
    if dim <= target:
        return dim
    t = (target // align) * align
    while t >= align:
        if dim % t == 0:
            return t
        t -= align
    return dim


# ----------------------------- Pallas kernels ------------------------------

def _linear_kernel(x_ref, w_ref, b_ref, o_ref, acc_ref):
    """One (tm, tn) output tile, accumulated over the k (reduction) grid axis."""
    kk = pl.program_id(2)

    @pl.when(kk == 0)
    def _init():
        acc_ref[...] = jnp.zeros_like(acc_ref)

    acc_ref[...] += jnp.dot(x_ref[...], w_ref[...],
                            preferred_element_type=jnp.float32)

    @pl.when(kk == pl.num_programs(2) - 1)
    def _finalize():
        o_ref[...] = (acc_ref[...] + b_ref[...].astype(jnp.float32)
                      ).astype(o_ref.dtype)


def _qkv_proj_kernel(x_ref, wq_ref, wk_ref, wv_ref, bq_ref, bk_ref, bv_ref,
                     q_ref, k_ref, v_ref, qacc_ref, kacc_ref, vacc_ref):
    """Fused Q/K/V projection: X tile loaded once, reused for three matmuls."""
    kk = pl.program_id(2)

    @pl.when(kk == 0)
    def _init():
        qacc_ref[...] = jnp.zeros_like(qacc_ref)
        kacc_ref[...] = jnp.zeros_like(kacc_ref)
        vacc_ref[...] = jnp.zeros_like(vacc_ref)

    x = x_ref[...]
    qacc_ref[...] += jnp.dot(x, wq_ref[...], preferred_element_type=jnp.float32)
    kacc_ref[...] += jnp.dot(x, wk_ref[...], preferred_element_type=jnp.float32)
    vacc_ref[...] += jnp.dot(x, wv_ref[...], preferred_element_type=jnp.float32)

    @pl.when(kk == pl.num_programs(2) - 1)
    def _finalize():
        q_ref[...] = (qacc_ref[...] + bq_ref[...].astype(jnp.float32)
                      ).astype(q_ref.dtype)
        k_ref[...] = (kacc_ref[...] + bk_ref[...].astype(jnp.float32)
                      ).astype(k_ref.dtype)
        v_ref[...] = (vacc_ref[...] + bv_ref[...].astype(jnp.float32)
                      ).astype(v_ref.dtype)


def _flash_attn_kernel(q_ref, k_ref, v_ref, o_ref, m_ref, l_ref, acc_ref, *,
                       num_heads, head_dim, tq, tkv):
    """Flash-attention with causal masking.

    Heads are split via static column slices of the (tq, D) / (tkv, D) blocks;
    the full SxS score matrix is never materialized.  Q is pre-scaled by
    1/sqrt(Dh) (folded into Wq/bq), so there is no per-tile scale multiply.

    Scratch:
      m_ref, l_ref : (H, tq, 1)  f32   online-softmax statistics
      acc_ref      : (H, tq, Dh) f32   un-normalized output accumulator

    Note on masking: m is initialized to -1e30 and masked scores are -1e30,
    which is safe here because kv tile 0 (which always contains the diagonal
    column 0) is computed for every q tile, so every row sees at least one
    finite score.  If this kernel is reused with a shifted causal offset or a
    sliding window, guard fully-masked rows explicitly.
    """
    qi = pl.program_id(1)
    ki = pl.program_id(2)

    @pl.when(ki == 0)
    def _init():
        m_ref[...] = jnp.full_like(m_ref, -1e30)
        l_ref[...] = jnp.zeros_like(l_ref)
        acc_ref[...] = jnp.zeros_like(acc_ref)

    q_start = qi * tq
    kv_start = ki * tkv

    def _online_softmax_update(apply_mask):
        if apply_mask:
            row = q_start + lax.broadcasted_iota(jnp.int32, (tq, tkv), 0)
            col = kv_start + lax.broadcasted_iota(jnp.int32, (tq, tkv), 1)
            causal = col <= row
        for h in range(num_heads):
            lo, hi = h * head_dim, (h + 1) * head_dim
            qh = q_ref[0, :, lo:hi]      # already scaled by 1/sqrt(Dh) via Wq
            kh = k_ref[0, :, lo:hi]
            vh = v_ref[0, :, lo:hi]

            # contract last dims directly: no k.T copy through the XLU
            s = lax.dot_general(qh, kh,
                                dimension_numbers=(((1,), (1,)), ((), ())),
                                preferred_element_type=jnp.float32)  # (tq,tkv)
            if apply_mask:
                s = jnp.where(causal, s, -1e30)

            m_prev = m_ref[h]                                         # (tq,1)
            m_new = jnp.maximum(m_prev, jnp.max(s, axis=-1, keepdims=True))
            alpha = jnp.exp(m_prev - m_new)
            p = jnp.exp(s - m_new)

            l_ref[h] = alpha * l_ref[h] + jnp.sum(p, axis=-1, keepdims=True)
            acc_ref[h] = alpha * acc_ref[h] + jnp.dot(
                p.astype(vh.dtype), vh, preferred_element_type=jnp.float32)
            m_ref[h] = m_new

    # Fast path: kv tile strictly below the diagonal -> no mask work at all.
    @pl.when(kv_start + (tkv - 1) <= q_start)
    def _unmasked():
        _online_softmax_update(apply_mask=False)

    # Diagonal-crossing tiles: masked path.  Tiles entirely above the diagonal
    # satisfy neither condition and are skipped (their K/V DMA is also skipped
    # by the clamped kv index_map in the wrapper).
    on_diag = jnp.logical_and(kv_start <= q_start + (tq - 1),
                              kv_start + (tkv - 1) > q_start)

    @pl.when(on_diag)
    def _masked():
        _online_softmax_update(apply_mask=True)

    @pl.when(ki == pl.num_programs(2) - 1)
    def _finalize():
        if head_dim % 128 == 0:
            # lane-aligned, unmasked per-head stores
            for h in range(num_heads):
                lo, hi = h * head_dim, (h + 1) * head_dim
                inv = pl.reciprocal(l_ref[h], approx=False)
                o_ref[0, :, lo:hi] = (acc_ref[h] * inv).astype(o_ref.dtype)
        else:
            # single lane-dense (tq, D) store
            parts = []
            for h in range(num_heads):
                inv = pl.reciprocal(l_ref[h], approx=False)
                parts.append(acc_ref[h] * inv)
            o_ref[0] = jnp.concatenate(parts, axis=-1).astype(o_ref.dtype)


# ------------------------------ JAX wrappers --------------------------------

def pallas_linear(x2d, w, b, *, tm=PROJ_TM_TARGET, tn=PROJ_TN_TARGET,
                  tk=PROJ_TK_TARGET):
    """x2d: (N, d_in), w: (d_in, d_out), b: (d_out,) -> (N, d_out)."""
    N, d_in = x2d.shape
    d_out = w.shape[1]
    tm = _pick_tile(N, tm, 8)
    tn = _pick_tile(d_out, tn, 128)
    tk = _pick_tile(d_in, tk, 128)
    grid = (N // tm, d_out // tn, d_in // tk)

    return pl.pallas_call(
        _linear_kernel,
        out_shape=jax.ShapeDtypeStruct((N, d_out), x2d.dtype),
        grid_spec=pltpu.PrefetchScalarGridSpec(
            num_scalar_prefetch=0,
            grid=grid,
            in_specs=[
                pl.BlockSpec((tm, tk), lambda i, j, k: (i, k)),
                pl.BlockSpec((tk, tn), lambda i, j, k: (k, j)),
                pl.BlockSpec((1, tn), lambda i, j, k: (0, j)),
            ],
            out_specs=pl.BlockSpec((tm, tn), lambda i, j, k: (i, j)),
            scratch_shapes=[pltpu.VMEM((tm, tn), jnp.float32)],
        ),
        compiler_params=pltpu.CompilerParams(
            dimension_semantics=("parallel", "parallel", "arbitrary"),
            vmem_limit_bytes=VMEM_LIMIT),
    )(x2d, w, b.reshape(1, d_out))


def pallas_qkv_proj(x2d, wq, wk, wv, bq, bk, bv, *, tm=PROJ_TM_TARGET,
                    tn=PROJ_TN_TARGET, tk=PROJ_TK_TARGET):
    """Fused q/k/v projections of the same input (self-attention)."""
    N, d_in = x2d.shape
    d_out = wq.shape[1]
    tm = _pick_tile(N, tm, 8)
    tn = _pick_tile(d_out, tn, 128)
    tk = _pick_tile(d_in, tk, 128)
    grid = (N // tm, d_out // tn, d_in // tk)

    x_spec = pl.BlockSpec((tm, tk), lambda i, j, k: (i, k))
    w_spec = pl.BlockSpec((tk, tn), lambda i, j, k: (k, j))
    b_spec = pl.BlockSpec((1, tn), lambda i, j, k: (0, j))
    o_spec = pl.BlockSpec((tm, tn), lambda i, j, k: (i, j))
    out_sds = jax.ShapeDtypeStruct((N, d_out), x2d.dtype)

    return pl.pallas_call(
        _qkv_proj_kernel,
        out_shape=(out_sds, out_sds, out_sds),
        grid_spec=pltpu.PrefetchScalarGridSpec(
            num_scalar_prefetch=0,
            grid=grid,
            in_specs=[x_spec, w_spec, w_spec, w_spec, b_spec, b_spec, b_spec],
            out_specs=(o_spec, o_spec, o_spec),
            scratch_shapes=[pltpu.VMEM((tm, tn), jnp.float32)
                            for _ in range(3)],
        ),
        compiler_params=pltpu.CompilerParams(
            dimension_semantics=("parallel", "parallel", "arbitrary"),
            vmem_limit_bytes=VMEM_LIMIT),
    )(x2d, wq, wk, wv,
      bq.reshape(1, d_out), bk.reshape(1, d_out), bv.reshape(1, d_out))


def pallas_causal_flash_attention(q, k, v, *, num_heads):
    """q, k, v: (B, S, D) -> (B, S, D). Causal multi-head attention.

    q must already carry the 1/sqrt(head_dim) scale (folded into Wq/bq)."""
    B, S, D = q.shape
    assert D % num_heads == 0
    head_dim = D // num_heads

    tq = _pick_tile(S, ATTN_TILE_TARGET, 8)
    # v7x: make sure the 'parallel' (B, q-tile) axes give both TensorCores
    # work; otherwise drop to 128-tiles.
    if _IS_V7 and tq > 128 and B * max(1, S // tq) < 2:
        tq = _pick_tile(S, 128, 8)
    tkv = tq
    grid = (B, S // tq, S // tkv)

    # kv index_map clamps to the last block this q tile can need, so steps
    # whose kv tile lies entirely above the causal diagonal map to the
    # already-resident block and no new K/V DMA is issued.
    def kv_index_map(b, qi, ki):
        last_needed = (qi * tq + (tq - 1)) // tkv
        return (b, jnp.minimum(ki, last_needed), 0)

    q_spec = pl.BlockSpec((1, tq, D), lambda b, qi, ki: (b, qi, 0))
    kv_spec = pl.BlockSpec((1, tkv, D), kv_index_map)
    o_spec = pl.BlockSpec((1, tq, D), lambda b, qi, ki: (b, qi, 0))

    kernel = functools.partial(_flash_attn_kernel, num_heads=num_heads,
                               head_dim=head_dim, tq=tq, tkv=tkv)

    return pl.pallas_call(
        kernel,
        out_shape=jax.ShapeDtypeStruct((B, S, D), q.dtype),
        grid_spec=pltpu.PrefetchScalarGridSpec(
            num_scalar_prefetch=0,
            grid=grid,
            in_specs=[q_spec, kv_spec, kv_spec],
            out_specs=o_spec,
            scratch_shapes=[
                pltpu.VMEM((num_heads, tq, 1), jnp.float32),         # m
                pltpu.VMEM((num_heads, tq, 1), jnp.float32),         # l
                pltpu.VMEM((num_heads, tq, head_dim), jnp.float32),  # acc
            ],
        ),
        compiler_params=pltpu.CompilerParams(
            dimension_semantics=("parallel", "parallel", "arbitrary"),
            vmem_limit_bytes=VMEM_LIMIT),
    )(q, k, v)


# ------------------------------- module --------------------------------------

class MultiHeadAttentionPallas:
    def __init__(self, num_heads, d_model, key):
        assert d_model % num_heads == 0
        self.num_heads = num_heads
        self.d_model = d_model
        self.head_dims = d_model // num_heads
        ks = jax.random.split(key, 8)
        bound = 1.0 / math.sqrt(d_model)

        def init_w(k):
            # stored as (d_in, d_out) so kernels compute x @ W + b
            return jax.random.uniform(k, (d_model, d_model), jnp.float32,
                                      -bound, bound)

        def init_b(k):
            return jax.random.uniform(k, (d_model,), jnp.float32, -bound, bound)

        self.wq, self.bq = init_w(ks[0]), init_b(ks[1])
        self.wk, self.bk = init_w(ks[2]), init_b(ks[3])
        self.wv, self.bv = init_w(ks[4]), init_b(ks[5])
        self.wo, self.bo = init_w(ks[6]), init_b(ks[7])

        # Fold the attention 1/sqrt(head_dim) scale into the query projection
        # (one-time constant transform; removes the per-tile scale multiply
        # inside the attention kernel).
        q_scale = 1.0 / math.sqrt(self.head_dims)
        self.wq_s = self.wq * q_scale
        self.bq_s = self.bq * q_scale

    def __call__(self, query, key, value):
        B, S, D = query.shape
        # NOTE: the fused-QKV fast path keys on Python object identity; under
        # jit/vmap with distinct-but-equal tracers it falls back to three
        # separate projections (perf-only hazard, numerics identical).
        if query is key and key is value:
            # self-attention: stream X from HBM once for all three projections
            q2, k2, v2 = pallas_qkv_proj(
                query.reshape(B * S, D),
                self.wq_s, self.wk, self.wv, self.bq_s, self.bk, self.bv)
        else:
            q2 = pallas_linear(query.reshape(B * S, D), self.wq_s, self.bq_s)
            k2 = pallas_linear(key.reshape(B * S, D), self.wk, self.bk)
            v2 = pallas_linear(value.reshape(B * S, D), self.wv, self.bv)

        q = q2.reshape(B, S, D)
        k = k2.reshape(B, S, D)
        v = v2.reshape(B, S, D)

        # Heads are split inside the attention kernel (static column slices);
        # no HBM transposes before or after attention.
        z = pallas_causal_flash_attention(q, k, v, num_heads=self.num_heads)

        out = pallas_linear(z.reshape(B * S, D), self.wo, self.bo)
        return out.reshape(B, S, D)


# ------------------------------ reference check -----------------------------

def reference_mha(mod, query, key, value):
    hp = lax.Precision.HIGHEST
    B, S, D = query.shape
    H, Dh = mod.num_heads, mod.head_dims
    q = jnp.matmul(query, mod.wq, precision=hp) + mod.bq
    k = jnp.matmul(key, mod.wk, precision=hp) + mod.bk
    v = jnp.matmul(value, mod.wv, precision=hp) + mod.bv
    q = q.reshape(B, S, H, Dh).transpose(0, 2, 1, 3)
    k = k.reshape(B, S, H, Dh).transpose(0, 2, 1, 3)
    v = v.reshape(B, S, H, Dh).transpose(0, 2, 1, 3)
    wgt = jnp.einsum('bhqd,bhkd->bhqk', q, k, precision=hp) / math.sqrt(Dh)
    mask = jnp.tril(jnp.ones((S, S), bool))[None, None]
    wgt = jnp.where(mask, wgt, -jnp.inf)
    wgt = jax.nn.softmax(wgt, axis=-1)
    z = jnp.einsum('bhqk,bhkd->bhqd', wgt, v, precision=hp)
    z = z.transpose(0, 2, 1, 3).reshape(B, S, D)
    return jnp.matmul(z, mod.wo, precision=hp) + mod.bo


if __name__ == "__main__":
    root = jax.random.PRNGKey(0)
    k_param, kq, kk_, kv_, kx, kp2, kx2 = jax.random.split(root, 7)

    # --- small config: full-extent blocks, separate q/k/v projection path ----
    batch, seq, d_model, num_heads = 2, 8, 32, 4
    mha = MultiHeadAttentionPallas(num_heads, d_model, k_param)
    query = jax.random.normal(kq, (batch, seq, d_model), jnp.float32)
    key = jax.random.normal(kk_, (batch, seq, d_model), jnp.float32)
    value = jax.random.normal(kv_, (batch, seq, d_model), jnp.float32)

    out = jax.block_until_ready(mha(query, key, value))
    ref = reference_mha(mha, query, key, value)
    assert out.shape == (batch, seq, d_model)
    assert jnp.allclose(out, ref, atol=5e-4, rtol=5e-4), "cross-attn mismatch"

    # --- self-attention: exercises the fused QKV projection path -------------
    x = jax.random.normal(kx, (batch, seq, d_model), jnp.float32)
    out_self = jax.block_until_ready(mha(x, x, x))
    ref_self = reference_mha(mha, x, x, x)
    assert jnp.allclose(out_self, ref_self, atol=5e-4, rtol=5e-4), \
        "fused-QKV self-attn mismatch"

    # --- medium config: multi-tile grids, k-accumulation, causal tile skip
    #     with clamped K/V DMA, masked + unmasked attention paths -------------
    batch2, seq2, d_model2, num_heads2 = 1, 512, 512, 8
    mha2 = MultiHeadAttentionPallas(num_heads2, d_model2, kp2)
    x2 = jax.random.normal(kx2, (batch2, seq2, d_model2), jnp.float32)
    out2 = jax.block_until_ready(mha2(x2, x2, x2))
    ref2 = reference_mha(mha2, x2, x2, x2)
    assert out2.shape == (batch2, seq2, d_model2)
    assert jnp.allclose(out2, ref2, atol=5e-4, rtol=5e-4), "tiled-path mismatch"

    print("KERNEL_OK")
</pallas_src>

<mosaic_0001>
module attributes {stable_mosaic.version = 11 : i64} {
  func.func @_linear_kernel(%arg0: i32, %arg1: i32, %arg2: i32, %arg3: memref<16x32xf32, #tpu.memory_space<vmem>>, %arg4: memref<32x32xf32, #tpu.memory_space<vmem>>, %arg5: memref<1x32xf32, #tpu.memory_space<vmem>>, %arg6: memref<16x32xf32, #tpu.memory_space<vmem>>, %arg7: memref<16x32xf32, #tpu.memory_space<vmem>>) attributes {dimension_semantics = [#tpu.dimension_semantics<parallel>, #tpu.dimension_semantics<parallel>, #tpu.dimension_semantics<arbitrary>], iteration_bounds = array<i64: 1, 1, 1>, scalar_prefetch = 0 : i64, scratch_operands = 1 : i64, tpu.core_type = #tpu.core_type<tc>, window_params = [{transform_indices = @transform_0, window_bounds = array<i64: 16, 32>}, {transform_indices = @transform_1, window_bounds = array<i64: 32, 32>}, {transform_indices = @transform_2, window_bounds = array<i64: 1, 32>}, {transform_indices = @transform_3, window_bounds = array<i64: 16, 32>}]} {
    %c0_i32 = arith.constant 0 : i32
    %0 = arith.cmpi eq, %arg2, %c0_i32 : i32
    %1 = arith.extui %0 : i1 to i32
    %c0_i32_0 = arith.constant 0 : i32
    %2 = arith.cmpi ne, %1, %c0_i32_0 : i32
    scf.if %2 {
      %cst_10 = arith.constant 0.000000e+00 : f32
      %12 = vector.broadcast %cst_10 : f32 to vector<16x32xf32>
      %c0_11 = arith.constant 0 : index
      %c0_12 = arith.constant 0 : index
      %13 = vector.load %arg7[%c0_11, %c0_12] : memref<16x32xf32, #tpu.memory_space<vmem>>, vector<16x32xf32>
      tpu.vector_store %arg7[%c0_11, %c0_12], %12 {strides = array<i32>} : memref<16x32xf32, #tpu.memory_space<vmem>>, vector<16x32xf32>,
    } else {
    }
    %c0 = arith.constant 0 : index
    %c0_1 = arith.constant 0 : index
    %3 = vector.load %arg7[%c0, %c0_1] : memref<16x32xf32, #tpu.memory_space<vmem>>, vector<16x32xf32>
    %c0_2 = arith.constant 0 : index
    %c0_3 = arith.constant 0 : index
    %4 = vector.load %arg3[%c0_2, %c0_3] : memref<16x32xf32, #tpu.memory_space<vmem>>, vector<16x32xf32>
    %c0_4 = arith.constant 0 : index
    %c0_5 = arith.constant 0 : index
    %5 = vector.load %arg4[%c0_4, %c0_5] : memref<32x32xf32, #tpu.memory_space<vmem>>, vector<32x32xf32>
    %cst = arith.constant dense<0.000000e+00> : vector<16x32xf32>
    %6 = tpu.matmul %4, %5, %cst {dimension_numbers = #tpu.dot_dimension_numbers<[1], [0], [0], [1], [0, 0, 1, 1], [], []>} : vector<16x32xf32>, vector<32x32xf32>, vector<16x32xf32> -> vector<16x32xf32>
    %7 = arith.addf %3, %6 : vector<16x32xf32>
    %c0_6 = arith.constant 0 : index
    %c0_7 = arith.constant 0 : index
    %8 = vector.load %arg7[%c0_6, %c0_7] : memref<16x32xf32, #tpu.memory_space<vmem>>, vector<16x32xf32>
    tpu.vector_store %arg7[%c0_6, %c0_7], %7 {strides = array<i32>} : memref<16x32xf32, #tpu.memory_space<vmem>>, vector<16x32xf32>,
    %c0_i32_8 = arith.constant 0 : i32
    %9 = arith.cmpi eq, %arg2, %c0_i32_8 : i32
    %10 = arith.extui %9 : i1 to i32
    %c0_i32_9 = arith.constant 0 : i32
    %11 = arith.cmpi ne, %10, %c0_i32_9 : i32
    scf.if %11 {
      %c0_10 = arith.constant 0 : index
      %c0_11 = arith.constant 0 : index
      %12 = vector.load %arg7[%c0_10, %c0_11] : memref<16x32xf32, #tpu.memory_space<vmem>>, vector<16x32xf32>
      %c0_12 = arith.constant 0 : index
      %c0_13 = arith.constant 0 : index
      %13 = vector.load %arg5[%c0_12, %c0_13] : memref<1x32xf32, #tpu.memory_space<vmem>>, vector<1x32xf32>
      %14 = vector.broadcast %13 : vector<1x32xf32> to vector<16x32xf32>
      %15 = arith.addf %12, %14 : vector<16x32xf32>
      %c0_14 = arith.constant 0 : index
      %c0_15 = arith.constant 0 : index
      %16 = vector.load %arg6[%c0_14, %c0_15] : memref<16x32xf32, #tpu.memory_space<vmem>>, vector<16x32xf32>
      tpu.vector_store %arg6[%c0_14, %c0_15], %15 {strides = array<i32>} : memref<16x32xf32, #tpu.memory_space<vmem>>, vector<16x32xf32>,
    } else {
    }
    return
  }
  func.func @transform_0(%arg0: i32, %arg1: i32, %arg2: i32) -> (i32, i32) {
    %c0_i32 = arith.constant 0 : i32
    return %arg0, %arg2 : i32, i32
  }
  func.func @transform_1(%arg0: i32, %arg1: i32, %arg2: i32) -> (i32, i32) {
    %c0_i32 = arith.constant 0 : i32
    return %arg2, %arg1 : i32, i32
  }
  func.func @transform_2(%arg0: i32, %arg1: i32, %arg2: i32) -> (i32, i32) {
    %c0_i32 = arith.constant 0 : i32
    %c0_i32_0 = arith.constant 0 : i32
    return %c0_i32, %arg1 : i32, i32
  }
  func.func @transform_3(%arg0: i32, %arg1: i32, %arg2: i32) -> (i32, i32) {
    %c0_i32 = arith.constant 0 : i32
    return %arg0, %arg1 : i32, i32
  }
}

</mosaic_0001>

<llo_original>
// kernel: tpu_custom_call.1
$region0: #{tpu_custom_call.1}
  #allocation0 [shape = 'u32[]', space=smem, size = 0x4, offset = 0x4, fixed_abs, tag = 'smem constant byte address 0x4 - core index']
  #allocation1 [shape = 'u32[144,128]{1,0:T(1,128)}', space=vmem, size = 0x12000, scoped, tag = 'internal scratch']
  #allocation2 [shape = 'f32[16,32]{1,0:T(8,128)}', space=vmem, size = 0x2000, scoped, tag = 'scratch operand']
  %s0 = inlined_call_operand.hbm [shape: f32[16,32], index: 0, kind: input, shape index: {}]
  %s1 = inlined_call_operand.hbm [shape: f32[32,32], index: 1, kind: input, shape index: {}]
  %s2 = inlined_call_operand.vmem [shape: f32[1,32], index: 2, kind: input, shape index: {}]
  %s3 = inlined_call_operand.hbm [shape: f32[16,32], index: 3, kind: output, shape index: {}]
  %s4 = sld [smem:[#allocation0]]
  $region38: #{tpu_custom_call.1} parent=0
    _
  %s6 = ssub.s32 1, %s4
  %s7 = scalar_select 0, %s6, %s4
  $region1: #{tpu_custom_call.1} parent=0
    #allocation3 [shape = 'u8[8192]{0}', space=vmem, size = 0x2000, scoped, tag = 'input window, operand 0, single buffered']
    #allocation4 [shape = 's32[1]{0}', space=sflag, size = 0x4, scoped, tag = 'scoped memory for tpu_custom_call.1']
    #allocation5 [shape = 's32[1]{0}', space=sflag, size = 0x4, scoped, tag = 'scoped memory for tpu_custom_call.1']
    #allocation6 [shape = 'u8[16384]{0}', space=vmem, size = 0x4000, scoped, tag = 'input window, operand 1, single buffered']
    #allocation7 [shape = 's32[1]{0}', space=sflag, size = 0x4, scoped, tag = 'scoped memory for tpu_custom_call.1']
    #allocation8 [shape = 'u8[8192]{0}', space=vmem, size = 0x2000, scoped, tag = 'output window, operand 0, single buffered']
    %8 = vsyncpa [#allocation4], 0
    %9 = vsyncpa [#allocation7], 0
    %10 = vsyncpa [#allocation5], 0
    // Predicated region
    $region2: #{tpu_custom_call.1} parent=1 // pred_check
      _
    $region3: #{tpu_custom_call.1} parent=1 // pred_check_branch
      %12 = sbr.rel (0) target = $region5
    $region4: #{tpu_custom_call.1} parent=1 // pred_region
      %s14 = ssub.s32 256, 256
      %15 = vsyncadd [#allocation4], %s14
      %s16 = sshll.u32 [#allocation3], 4
      %s17 = int_to_ptr.vmem [resolvable:$true] %s16
      %22 = dma.hbm_to_vmem [thread:$0]  %s0, 256, %s17, [#allocation4], 128, 128, 8
    $region5: #{tpu_custom_call.1} parent=1 // pred_fallthru
      _
    // Predicated region
    $region6: #{tpu_custom_call.1} parent=1 // pred_check
      _
    $region7: #{tpu_custom_call.1} parent=1 // pred_check_branch
      %24 = sbr.rel (0) target = $region9
    $region8: #{tpu_custom_call.1} parent=1 // pred_region
      %s26 = ssub.s32 512, 512
      %27 = vsyncadd [#allocation7], %s26
      %s28 = sshll.u32 [#allocation6], 4
      %s29 = int_to_ptr.vmem [resolvable:$true] %s28
      %34 = dma.hbm_to_vmem [thread:$0]  %s1, 512, %s29, [#allocation7], 128, 128, 8
    $region9: #{tpu_custom_call.1} parent=1 // pred_fallthru
      _
    // Predicated region
    $region10: #{tpu_custom_call.1} parent=1 // pred_check
      _
    $region11: #{tpu_custom_call.1} parent=1 // pred_check_branch
      %36 = sbr.rel (0) target = $region13
    $region12: #{tpu_custom_call.1} parent=1 // pred_region
      _
    $region13: #{tpu_custom_call.1} parent=1 // pred_fallthru
      _
    // Predicated region
    $region14: #{tpu_custom_call.1} parent=1 // pred_check
      _
    $region15: #{tpu_custom_call.1} parent=1 // pred_check_branch
      %38 = sbr.rel (0) target = $region17
    $region16: #{tpu_custom_call.1} parent=1 // pred_region
      %39 = dma.done [#allocation4], 256
    $region17: #{tpu_custom_call.1} parent=1 // pred_fallthru
      _
    // Predicated region
    $region18: #{tpu_custom_call.1} parent=1 // pred_check
      _
    $region19: #{tpu_custom_call.1} parent=1 // pred_check_branch
      %41 = sbr.rel (0) target = $region21
    $region20: #{tpu_custom_call.1} parent=1 // pred_region
      %42 = dma.done [#allocation7], 512
    $region21: #{tpu_custom_call.1} parent=1 // pred_fallthru
      _
    %p43 = scmp.eq.s32.totalorder 0, 0
    // Predicated region
    $region22: #{tpu_custom_call.1} parent=1 // pred_check
      %p44 = pneg %p43
    $region23: #{tpu_custom_call.1} parent=1 // pred_check_branch
      %46 = sbr.rel (%p44) target = $region25
    $region24: #{tpu_custom_call.1} parent=1 // pred_region
      %vm47 = vcmask 261120
      %48 = vst.msk [vmem:[#allocation2] sm:$0xff] %vm47, 0.0
      %49 = vst.msk [vmem:[#allocation2 + $0x8] sm:$0xff] %vm47, 0.0
    $region25: #{tpu_custom_call.1} parent=1 // pred_fallthru
      _
    %v50 = vld [vmem:[#allocation2] sm:$0xff]
    %v51 = vld [vmem:[#allocation2 + $0x8] sm:$0xff]
    %v52 = vld [vmem:[#allocation3] sm:$0xff]
    %v53 = vld [vmem:[#allocation3 + $0x8] sm:$0xff]
    %v54 = vld [vmem:[#allocation6] sm:$0xff]
    %v55 = vld [vmem:[#allocation6 + $0x8] sm:$0xff]
    %v56 = vld [vmem:[#allocation6 + $0x10] sm:$0xff]
    %v57 = vld [vmem:[#allocation6 + $0x18] sm:$0xff]
    %vm58 = vcmask 261120
    %v60 = vsel %vm58, %v52, 0
    %v63 = vsel %vm58, %v53, 0
    %65 = vmatprep.subr.mxu0 0.0
    %66 = vmatpush1.msra.mxu0 %v54
    %67 = vmatprep.subr.mxu0 0.0
    %68 = vmatpush1.msra.mxu0 %v55
    %69 = vmatprep.subr.mxu0 0.0
    %70 = vmatpush1.msra.mxu0 %v56
    %71 = vmatprep.subr.mxu0 0.0
    %72 = vmatpush1.msra.mxu0 %v57
    %73 = vmatprep.subr.mxu0 0.0
    %74 = vmatpush1.msra.mxu0 0.0
    %75 = vmatprep.subr.mxu0 0.0
    %76 = vmatpush1.msra.mxu0 0.0
    %77 = vmatprep.subr.mxu0 0.0
    %78 = vmatpush1.msra.mxu0 0.0
    %79 = vmatprep.subr.mxu0 0.0
    %80 = vmatpush1.msra.mxu0 0.0
    %81 = vmatprep.subr.mxu0 0.0
    %82 = vmatpush1.msra.mxu0 0.0
    %83 = vmatprep.subr.mxu0 0.0
    %84 = vmatpush1.msra.mxu0 0.0
    %85 = vmatprep.subr.mxu0 0.0
    %86 = vmatpush1.msra.mxu0 0.0
    %87 = vmatprep.subr.mxu0 0.0
    %88 = vmatpush1.msra.mxu0 0.0
    %89 = vmatprep.subr.mxu0 0.0
    %90 = vmatpush1.msra.mxu0 0.0
    %91 = vmatprep.subr.mxu0 0.0
    %92 = vmatpush1.msra.mxu0 0.0
    %93 = vmatprep.subr.mxu0 0.0
    %94 = vmatpush1.msra.mxu0 0.0
    %95 = vmatprep.subr.mxu0 0.0
    %96 = vmatpush1.msra.mxu0 0.0
    %97 = vmatprep.subr.mxu0 0.0
    %98 = vmatpush1.msra.mxu0 0.0
    %99 = vmatprep.subr.mxu0 0.0
    %100 = vmatpush1.msra.mxu0 0.0
    %101 = vmatprep.subr.mxu0 0.0
    %102 = vmatpush1.msra.mxu0 0.0
    %103 = vmatprep.subr.mxu0 0.0
    %104 = vmatpush1.msra.mxu0 0.0
    %105 = vmatprep.subr.mxu0 0.0
    %106 = vmatpush1.msra.mxu0 0.0
    %107 = vmatprep.subr.mxu0 0.0
    %108 = vmatpush1.msra.mxu0 0.0
    %109 = vmatprep.subr.mxu0 0.0
    %110 = vmatpush1.msra.mxu0 0.0
    %111 = vmatprep.subr.mxu0 0.0
    %112 = vmatpush1.msra.mxu0 0.0
    %113 = vmatprep.subr.mxu0 0.0
    %114 = vmatpush1.msra.mxu0 0.0
    %115 = vmatprep.subr.mxu0 0.0
    %116 = vmatpush1.msra.mxu0 0.0
    %117 = vmatprep.subr.mxu0 0.0
    %118 = vmatpush1.msra.mxu0 0.0
    %119 = vmatprep.subr.mxu0 0.0
    %120 = vmatpush1.msra.mxu0 0.0
    %121 = vmatprep.subr.mxu0 0.0
    %122 = vmatpush1.msra.mxu0 0.0
    %123 = vmatprep.subr.mxu0 0.0
    %124 = vmatpush1.msra.mxu0 0.0
    %125 = vmatprep.subr.mxu0 0.0
    %126 = vmatpush1.msra.mxu0 0.0
    %127 = vmatprep.subr.mxu0 0.0
    %128 = vmatpush1.msra.mxu0 0.0
    %129 = vmatprep.mubr.f32.mxu0 0.0
    %130 = vmatmul.mubr.f32.gmra.mrb[0].mxu0 %v60
    %v131 = vpop.f32.mrb[0].mxu0
    %v132 = vadd.f32 0.0, %v131
    %v133 = vpop.f32.mrb[0].mxu0
    %134 = vmatprep.mubr.f32.mxu0 0.0
    %135 = vmatmul.mubr.f32.gmra.mrb[0].mxu0 %v63
    %v136 = vpop.f32.mrb[0].mxu0
    %v137 = vadd.f32 0.0, %v136
    %v138 = vpop.f32.mrb[0].mxu0
    %139 = vdwg.mxu0
    %v140 = vadd.f32 %v50, %v132
    %v141 = vadd.f32 %v51, %v137
    %142 = vst.msk [vmem:[#allocation2] sm:$0xff] %vm58, %v140
    %143 = vst.msk [vmem:[#allocation2 + $0x8] sm:$0xff] %vm58, %v141
    // Predicated region
    $region26: #{tpu_custom_call.1} parent=1 // pred_check
      %p144 = pneg %p43
    $region27: #{tpu_custom_call.1} parent=1 // pred_check_branch
      %146 = sbr.rel (%p144) target = $region29
    $region28: #{tpu_custom_call.1} parent=1 // pred_region
      %v147 = vld [vmem:[#allocation2] sm:$0xff]
      %v148 = vld [vmem:[#allocation2 + $0x8] sm:$0xff]
      %v149 = vld [vmem:[%s2] sm:$0x1]
      %v151 = vlaneseq
      %v152 = vshrl.u32 %v151, 7
      %v153 = vsub.s32 0, %v152
      %v154 = vrot.slane %v149, %v153
      %v156 = vadd.f32 %v147, %v154
      %v157 = vadd.f32 %v148, %v154
      %158 = vst.msk [vmem:[#allocation8] sm:$0xff] %vm58, %v156
      %159 = vst.msk [vmem:[#allocation8 + $0x8] sm:$0xff] %vm58, %v157
    $region29: #{tpu_custom_call.1} parent=1 // pred_fallthru
      _
    // Predicated region
    $region30: #{tpu_custom_call.1} parent=1 // pred_check
      _
    $region31: #{tpu_custom_call.1} parent=1 // pred_check_branch
      %161 = sbr.rel (0) target = $region33
    $region32: #{tpu_custom_call.1} parent=1 // pred_region
      %s163 = ssub.s32 256, 256
      %164 = vsyncadd [#allocation5], %s163
      %s165 = sshll.u32 [#allocation8], 4
      %s166 = int_to_ptr.vmem [resolvable:$true] %s165
      %171 = dma.vmem_to_hbm [thread:$0]  %s166, 256, %s3, [#allocation5], 128, 128, 8
    $region33: #{tpu_custom_call.1} parent=1 // pred_fallthru
      _
    // Predicated region
    $region34: #{tpu_custom_call.1} parent=1 // pred_check
      _
    $region35: #{tpu_custom_call.1} parent=1 // pred_check_branch
      %173 = sbr.rel (0) target = $region37
    $region36: #{tpu_custom_call.1} parent=1 // pred_region
      %174 = dma.done [#allocation5], 256
    $region37: #{tpu_custom_call.1} parent=1 // pred_fallthru
      _
    %175 = vsyncpa [#allocation4], 1
    %176 = vsyncpa [#allocation7], 1
    %177 = vsyncpa [#allocation5], 1

</llo_original>
